<compile_context>
chip_gen: v7x
topology: tpu7x:2x2x1
jax: 0.10.0
libtpu: 0.0.40
codegen_flags: <defaults>
</compile_context>

<pallas_src>
import jax
import jax.numpy as jnp
import numpy as np
from jax.experimental import pallas as pl
from jax.experimental.pallas import tpu as pltpu


def _scale_rows_kernel(x_ref, g_ref, o_ref):
    # x_ref: (ROW_BLOCK, HW_BLOCK)   activations for a block of (n, c) rows
    # g_ref: (ROW_BLOCK, 1)          per-row channel gate
    # o_ref: (ROW_BLOCK, HW_BLOCK)
    o_ref[...] = x_ref[...] * g_ref[...]       # single fused x * gate pass


def _choose_blocks(rows, hw, itemsize):
    """Pick (row_block, hw_block) from a ~4 MiB byte budget.

    Blocks are either (sublane_tile, 128)-aligned or equal to the full dim,
    so no wrapper-side padding is needed; partial edge blocks are masked by
    Pallas via the cdiv grid.
    """
    LANE = 128
    MAX_LANE_BLOCK = 8192
    TARGET_BLOCK_BYTES = 4 * 1024 * 1024   # ~16 MiB double-buffered in+out: v7x-safe
    sublane = {4: 8, 2: 16, 1: 32}.get(itemsize, 8)

    # Lane (spatial) axis.
    if hw <= LANE:
        hw_block = hw                                   # full-dim block is legal
    else:
        hw_block = min((hw // LANE) * LANE, MAX_LANE_BLOCK)

    # Sublane (n*c row) axis, derived from the byte budget.
    if rows <= sublane:
        row_block = rows                                # full-dim block is legal
    else:
        budget_rows = max(sublane, TARGET_BLOCK_BYTES // (hw_block * itemsize))
        budget_rows = (budget_rows // sublane) * sublane
        row_block = min(budget_rows, (rows // sublane) * sublane)

    return row_block, hw_block


def adacw_forward(x_nchw, latent, w1, w2, *, force_pallas=False):
    """AdaCW forward.

    x_nchw: (N, C, H, W)
    latent: (N, D)
    w1:     (C // reduction, D)  first Linear weight (no bias)
    w2:     (C, C // reduction)  second Linear weight (no bias)
    """
    n, c, h, w = x_nchw.shape
    hw = h * w
    rows = n * c
    itemsize = jnp.dtype(x_nchw.dtype).itemsize

    # ---- gating MLP, once per batch, in XLA (hoisted out of the kernel) ----
    hidden = jnp.maximum(latent.astype(jnp.float32) @ w1.astype(jnp.float32).T, 0.0)
    gate = jax.nn.sigmoid(hidden @ w2.astype(jnp.float32).T)        # (N, C) f32
    gate = gate.astype(x_nchw.dtype)

    # ---- tiny-problem fallback: a 1x1 Pallas grid is pure launch overhead ----
    if not force_pallas and rows * hw * itemsize < (1 << 20):
        return x_nchw * gate.reshape(n, c, 1, 1)

    # ---- blocking: rows on sublanes, flattened spatial on lanes ----
    row_block, hw_block = _choose_blocks(rows, hw, itemsize)
    grid = (pl.cdiv(rows, row_block), pl.cdiv(hw, hw_block))

    x_rows = x_nchw.reshape(rows, hw)       # contiguous reshape: no HBM copy
    g_rows = gate.reshape(rows, 1)

    out = pl.pallas_call(
        _scale_rows_kernel,
        out_shape=jax.ShapeDtypeStruct((rows, hw), x_nchw.dtype),
        grid_spec=pltpu.PrefetchScalarGridSpec(
            num_scalar_prefetch=0,
            grid=grid,
            in_specs=[
                pl.BlockSpec((row_block, hw_block), lambda r, s: (r, s)),  # x rows
                pl.BlockSpec((row_block, 1), lambda r, s: (r, 0)),         # gate
            ],
            out_specs=pl.BlockSpec((row_block, hw_block), lambda r, s: (r, s)),
        ),
        compiler_params=pltpu.CompilerParams(
            dimension_semantics=("parallel", "parallel"),
            vmem_limit_bytes=32 * 1024 * 1024,   # safe on v5e/v6e/v7x for 4 MiB blocks
        ),
    )(x_rows, g_rows)

    return out.reshape(n, c, h, w)


def adacw_reference(x, latent, w1, w2):
    """Pure-JAX reference mirroring the PyTorch module."""
    hidden = jnp.maximum(latent @ w1.T, 0.0)
    gate = jax.nn.sigmoid(hidden @ w2.T)                 # (N, C)
    return x * gate[:, :, None, None]


if __name__ == "__main__":
    # AdaCW(channel=8, reduction=4, latent_size=32) at a small spatial size.
    N, C, H, W = 2, 8, 16, 16
    D = 32
    REDUCTION = 4
    HIDDEN = C // REDUCTION

    key = jax.random.PRNGKey(0)
    kx, kl, k1, k2 = jax.random.split(key, 4)

    x = jax.random.normal(kx, (N, C, H, W), dtype=jnp.float32)
    latent = jax.random.normal(kl, (N, D), dtype=jnp.float32)
    # nn.Linear(bias=False) weights; exact init scheme is irrelevant to the kernel.
    w1 = jax.random.normal(k1, (HIDDEN, D), dtype=jnp.float32) * (1.0 / np.sqrt(D))
    w2 = jax.random.normal(k2, (C, HIDDEN), dtype=jnp.float32) * (1.0 / np.sqrt(HIDDEN))

    # Force the Pallas path so the kernel itself is exercised on this toy size.
    out = adacw_forward(x, latent, w1, w2, force_pallas=True)
    out = jax.block_until_ready(out)

    ref = adacw_reference(x, latent, w1, w2)
    np.testing.assert_allclose(np.asarray(out), np.asarray(ref),
                               rtol=1e-5, atol=1e-5)

    print("KERNEL_OK")
</pallas_src>

<mosaic_0001>
module attributes {stable_mosaic.version = 11 : i64} {
  func.func @_scale_rows_kernel(%arg0: i32, %arg1: i32, %arg2: memref<16x256xf32, #tpu.memory_space<vmem>>, %arg3: memref<16x1xf32, #tpu.memory_space<vmem>>, %arg4: memref<16x256xf32, #tpu.memory_space<vmem>>) attributes {dimension_semantics = [#tpu.dimension_semantics<parallel>, #tpu.dimension_semantics<parallel>], iteration_bounds = array<i64: 1, 1>, scalar_prefetch = 0 : i64, scratch_operands = 0 : i64, tpu.core_type = #tpu.core_type<tc>, window_params = [{transform_indices = @transform_0, window_bounds = array<i64: 16, 256>}, {transform_indices = @transform_1, window_bounds = array<i64: 16, 1>}, {transform_indices = @transform_2, window_bounds = array<i64: 16, 256>}]} {
    %c0 = arith.constant 0 : index
    %c0_0 = arith.constant 0 : index
    %0 = vector.load %arg2[%c0, %c0_0] : memref<16x256xf32, #tpu.memory_space<vmem>>, vector<16x256xf32>
    %c0_1 = arith.constant 0 : index
    %c0_2 = arith.constant 0 : index
    %1 = vector.load %arg3[%c0_1, %c0_2] : memref<16x1xf32, #tpu.memory_space<vmem>>, vector<16x1xf32>
    %2 = vector.broadcast %1 : vector<16x1xf32> to vector<16x256xf32>
    %3 = arith.mulf %0, %2 : vector<16x256xf32>
    %c0_3 = arith.constant 0 : index
    %c0_4 = arith.constant 0 : index
    %4 = vector.load %arg4[%c0_3, %c0_4] : memref<16x256xf32, #tpu.memory_space<vmem>>, vector<16x256xf32>
    tpu.vector_store %arg4[%c0_3, %c0_4], %3 {strides = array<i32>} : memref<16x256xf32, #tpu.memory_space<vmem>>, vector<16x256xf32>,
    return
  }
  func.func @transform_0(%arg0: i32, %arg1: i32) -> (i32, i32) {
    %c0_i32 = arith.constant 0 : i32
    return %arg0, %arg1 : i32, i32
  }
  func.func @transform_1(%arg0: i32, %arg1: i32) -> (i32, i32) {
    %c0_i32 = arith.constant 0 : i32
    %c0_i32_0 = arith.constant 0 : i32
    return %arg0, %c0_i32 : i32, i32
  }
  func.func @transform_2(%arg0: i32, %arg1: i32) -> (i32, i32) {
    %c0_i32 = arith.constant 0 : i32
    return %arg0, %arg1 : i32, i32
  }
}

</mosaic_0001>

<llo_original>
// kernel: tpu_custom_call.1
$region0: #{tpu_custom_call.1}
  #allocation0 [shape = 'u32[]', space=smem, size = 0x4, offset = 0x4, fixed_abs, tag = 'smem constant byte address 0x4 - core index']
  #allocation1 [shape = 'u32[144,128]{1,0:T(1,128)}', space=vmem, size = 0x12000, scoped, tag = 'internal scratch']
  %s0 = inlined_call_operand.hbm [shape: f32[16,256], index: 0, kind: input, shape index: {}]
  %s1 = inlined_call_operand.vmem [shape: f32[16,1], index: 1, kind: input, shape index: {}]
  %s2 = inlined_call_operand.hbm [shape: f32[16,256], index: 2, kind: output, shape index: {}]
  %s3 = sld [smem:[#allocation0]]
  $region22: #{tpu_custom_call.1} parent=0
    _
  %s5 = ssub.s32 1, %s3
  %s6 = scalar_select 0, %s5, %s3
  $region1: #{tpu_custom_call.1} parent=0
    #allocation2 [shape = 'u8[16384]{0}', space=vmem, size = 0x4000, scoped, tag = 'input window, operand 0, single buffered']
    #allocation3 [shape = 's32[1]{0}', space=sflag, size = 0x4, scoped, tag = 'scoped memory for tpu_custom_call.1']
    #allocation4 [shape = 's32[1]{0}', space=sflag, size = 0x4, scoped, tag = 'scoped memory for tpu_custom_call.1']
    #allocation5 [shape = 'u8[16384]{0}', space=vmem, size = 0x4000, scoped, tag = 'output window, operand 0, single buffered']
    %7 = vsyncpa [#allocation3], 0
    %8 = vsyncpa [#allocation4], 0
    // Predicated region
    $region2: #{tpu_custom_call.1} parent=1 // pred_check
      _
    $region3: #{tpu_custom_call.1} parent=1 // pred_check_branch
      %10 = sbr.rel (0) target = $region5
    $region4: #{tpu_custom_call.1} parent=1 // pred_region
      %s12 = ssub.s32 512, 512
      %13 = vsyncadd [#allocation3], %s12
      %s14 = sshll.u32 [#allocation2], 4
      %s15 = int_to_ptr.vmem [resolvable:$true] %s14
      %20 = dma.hbm_to_vmem [thread:$0]  %s0, 512, %s15, [#allocation3], 256, 256, 16
    $region5: #{tpu_custom_call.1} parent=1 // pred_fallthru
      _
    // Predicated region
    $region6: #{tpu_custom_call.1} parent=1 // pred_check
      _
    $region7: #{tpu_custom_call.1} parent=1 // pred_check_branch
      %22 = sbr.rel (0) target = $region9
    $region8: #{tpu_custom_call.1} parent=1 // pred_region
      _
    $region9: #{tpu_custom_call.1} parent=1 // pred_fallthru
      _
    // Predicated region
    $region10: #{tpu_custom_call.1} parent=1 // pred_check
      _
    $region11: #{tpu_custom_call.1} parent=1 // pred_check_branch
      %24 = sbr.rel (0) target = $region13
    $region12: #{tpu_custom_call.1} parent=1 // pred_region
      %25 = dma.done [#allocation3], 512
    $region13: #{tpu_custom_call.1} parent=1 // pred_fallthru
      _
    %v26 = vld [vmem:[#allocation2] sm:$0xff]
    %v27 = vld [vmem:[#allocation2 + $0x8] sm:$0xff]
    %v28 = vld [vmem:[#allocation2 + $0x10] sm:$0xff]
    %v29 = vld [vmem:[#allocation2 + $0x18] sm:$0xff]
    %v30 = vld [vmem:[%s1] sm:$0xff]
    %v31 = vld [vmem:[%s1 + $0x8] sm:$0xff]
    %33 = vset.pattern.permute.xlu0 0
    %34 = vperm.xlu0 %33, %v30
    %v35 = vpop.permute.xlu0 %34
    %38 = vset.pattern.permute.xlu0 0
    %39 = vperm.xlu0 %38, %v31
    %v40 = vpop.permute.xlu0 %39
    %v42 = vmul.f32 %v26, %v35
    %v43 = vmul.f32 %v27, %v35
    %v44 = vmul.f32 %v28, %v40
    %v45 = vmul.f32 %v29, %v40
    %46 = vst [vmem:[#allocation5] sm:$0xff] %v42
    %47 = vst [vmem:[#allocation5 + $0x8] sm:$0xff] %v43
    %48 = vst [vmem:[#allocation5 + $0x10] sm:$0xff] %v44
    %49 = vst [vmem:[#allocation5 + $0x18] sm:$0xff] %v45
    // Predicated region
    $region14: #{tpu_custom_call.1} parent=1 // pred_check
      _
    $region15: #{tpu_custom_call.1} parent=1 // pred_check_branch
      %51 = sbr.rel (0) target = $region17
    $region16: #{tpu_custom_call.1} parent=1 // pred_region
      %s53 = ssub.s32 512, 512
      %54 = vsyncadd [#allocation4], %s53
      %s55 = sshll.u32 [#allocation5], 4
      %s56 = int_to_ptr.vmem [resolvable:$true] %s55
      %61 = dma.vmem_to_hbm [thread:$0]  %s56, 512, %s2, [#allocation4], 256, 256, 16
    $region17: #{tpu_custom_call.1} parent=1 // pred_fallthru
      _
    // Predicated region
    $region18: #{tpu_custom_call.1} parent=1 // pred_check
      _
    $region19: #{tpu_custom_call.1} parent=1 // pred_check_branch
      %63 = sbr.rel (0) target = $region21
    $region20: #{tpu_custom_call.1} parent=1 // pred_region
      %64 = dma.done [#allocation4], 512
    $region21: #{tpu_custom_call.1} parent=1 // pred_fallthru
      _
    %65 = vsyncpa [#allocation3], 1
    %66 = vsyncpa [#allocation4], 1

</llo_original>
